<compile_context>
chip_gen: v7x
topology: tpu7x:2x2x1
jax: 0.10.0
libtpu: 0.0.40
codegen_flags: <defaults>
</compile_context>

<pallas_src>
import functools

import jax
import jax.numpy as jnp
from jax.experimental import pallas as pl
from jax.experimental.pallas import tpu as pltpu


def _modulate_kernel(x_ref, c_ref, w1_ref, b1_ref, w2s_ref, w2c_ref,
                     b2s_ref, b2c_ref, wo_ref, bo_ref, o_ref,
                     shift_sc, scale_sc):
    # Block shapes (leading size-1 dims squeezed away):
    #   x_ref : (St, T, D)        c_ref : (T, Cm)
    #   w1    : (Cm, Cm) bf16     b1    : (1, Cm) f32
    #   w2s/w2c : (Cm, D) bf16    b2s/b2c : (1, D) f32
    #   wo    : (D, D)  bf16      bo    : (1, D) f32
    #   o_ref : (St, T, D)
    #   shift_sc / scale_sc : (T, D) f32 scratch, resident across the S axis.
    St, T, D = x_ref.shape

    # adaLN modulation MLP (Linear -> SiLU -> Linear), computed once per batch
    # element; grid axis 1 tiles S and is marked "arbitrary".
    @pl.when(pl.program_id(1) == 0)
    def _():
        cb = c_ref[...].astype(jnp.bfloat16)                              # (T, Cm)
        h = jnp.dot(cb, w1_ref[...], preferred_element_type=jnp.float32)
        h = h + b1_ref[...]
        h = h * jax.nn.sigmoid(h)                                         # SiLU, f32
        hb = h.astype(jnp.bfloat16)
        shift_sc[...] = (jnp.dot(hb, w2s_ref[...],
                                 preferred_element_type=jnp.float32) + b2s_ref[...])
        scale_sc[...] = (jnp.dot(hb, w2c_ref[...],
                                 preferred_element_type=jnp.float32) + b2c_ref[...])

    # LayerNorm (no affine, eps=1e-6) + token-wise modulation, all f32 on the VPU.
    x = x_ref[...].astype(jnp.float32)                                    # (St, T, D)
    mean = jnp.mean(x, axis=-1, keepdims=True)
    xc = x - mean
    var = jnp.mean(xc * xc, axis=-1, keepdims=True)
    xn = xc * jax.lax.rsqrt(var + 1e-6)
    xm = xn * (1.0 + scale_sc[...])[None, :, :] + shift_sc[...][None, :, :]

    # Output projection on the MXU: bf16 operands, f32 accumulation.
    # (St,T,D)->(St*T,D) is a leading-dim collapse (free when D % 128 == 0).
    out = jnp.dot(xm.reshape(St * T, D).astype(jnp.bfloat16), wo_ref[...],
                  preferred_element_type=jnp.float32) + bo_ref[...]
    o_ref[...] = out.reshape(St, T, D).astype(o_ref.dtype)


def _pick_s_tile(S, T, D, Cm, budget_bytes):
    """Largest divisor of S whose double-buffered in/out blocks plus resident
    weights/scratch fit the VMEM budget. Returns (s_tile, bytes_needed)."""
    fixed = (2 * (Cm * Cm + 2 * Cm * D + D * D)        # bf16 weights
             + 4 * (Cm + 3 * D))                       # f32 biases
    fixed = 2 * fixed                                  # double-buffered
    fixed += 2 * 4 * T * Cm                            # c block, dbl-buffered (f32)
    fixed += 2 * 4 * T * D                             # shift/scale scratch (f32)
    per_row = 2 * 2 * 4 * T * D                        # x + out blocks, dbl-buffered
    max_rows = max(1, (budget_bytes - fixed) // per_row)
    st = 1
    for d in range(1, S + 1):
        if S % d == 0 and d <= max_rows:
            st = d
    return st, fixed + st * per_row


def modulate_layer_forward(x, c, params, *, batch):
    """x: (B*S, T, D) float32, c: (B, Tc, Cm) with Tc >= T."""
    B = batch
    BS, T, D = x.shape
    S = BS // B
    Cm = c.shape[-1]
    assert BS == B * S

    xb = x.reshape(B, S, T, D)                          # free view

    # Split w2/b2 into shift/scale halves (avoids in-kernel lane slice) and
    # pre-cast MXU weights to bf16 (f32 accumulation inside the kernel).
    w1 = params["w1"].astype(jnp.bfloat16)
    w2s = params["w2"][:, :D].astype(jnp.bfloat16)
    w2c = params["w2"][:, D:].astype(jnp.bfloat16)
    wo = params["wo"].astype(jnp.bfloat16)
    b1, bo = params["b1"], params["bo"]
    b2s, b2c = params["b2"][:, :D], params["b2"][:, D:]

    # Tile S so blocks fit a v7x-safe VMEM budget (keeps one big block per
    # batch element on larger-VMEM chips when it fits).
    budget = 24 * 1024 * 1024
    St, vmem_needed = _pick_s_tile(S, T, D, Cm, budget)
    vmem_limit = int(min(64 * 1024 * 1024, max(vmem_needed + (4 << 20), 16 << 20)))

    flops = 2 * B * S * T * D * D + 2 * B * T * Cm * (Cm + 2 * D)
    cost = pl.CostEstimate(
        flops=flops,
        transcendentals=B * T * Cm + B * S * T,
        bytes_accessed=4 * (2 * B * S * T * D + B * T * Cm)
                       + 2 * (Cm * Cm + 2 * Cm * D + D * D),
    )

    out = pl.pallas_call(
        _modulate_kernel,
        out_shape=jax.ShapeDtypeStruct((B, S, T, D), x.dtype),
        grid_spec=pltpu.PrefetchScalarGridSpec(
            num_scalar_prefetch=0,
            grid=(B, S // St),
            in_specs=[
                pl.BlockSpec((pl.Squeezed(), St, T, D),
                             lambda b, s: (b, s, 0, 0)),               # x
                pl.BlockSpec((pl.Squeezed(), T, Cm),
                             lambda b, s: (b, 0, 0)),                  # c (first T tokens)
                pl.BlockSpec((Cm, Cm), lambda b, s: (0, 0)),           # w1 (bf16)
                pl.BlockSpec((1, Cm), lambda b, s: (0, 0)),            # b1
                pl.BlockSpec((Cm, D), lambda b, s: (0, 0)),            # w2 shift half
                pl.BlockSpec((Cm, D), lambda b, s: (0, 0)),            # w2 scale half
                pl.BlockSpec((1, D), lambda b, s: (0, 0)),             # b2 shift half
                pl.BlockSpec((1, D), lambda b, s: (0, 0)),             # b2 scale half
                pl.BlockSpec((D, D), lambda b, s: (0, 0)),             # wo (bf16)
                pl.BlockSpec((1, D), lambda b, s: (0, 0)),             # bo
            ],
            out_specs=pl.BlockSpec((pl.Squeezed(), St, T, D),
                                   lambda b, s: (b, s, 0, 0)),
            scratch_shapes=[pltpu.VMEM((T, D), jnp.float32),           # shift
                            pltpu.VMEM((T, D), jnp.float32)],          # scale
        ),
        compiler_params=pltpu.CompilerParams(
            dimension_semantics=("parallel", "arbitrary"),
            vmem_limit_bytes=vmem_limit),
        cost_estimate=cost,
    )(xb, c, w1, b1, w2s, w2c, b2s, b2c, wo, bo)

    return out.reshape(BS, T, D)


def _xavier_uniform(key, shape, gain=0.1):
    fan_in, fan_out = shape[0], shape[1]
    bound = gain * (6.0 / (fan_in + fan_out)) ** 0.5
    return jax.random.uniform(key, shape, jnp.float32, -bound, bound)


def init_params(key, model_channels, out_channels):
    k1, k2, k3 = jax.random.split(key, 3)
    Cm, D = model_channels, out_channels
    # Weights stored (in, out) so the kernel does x @ W; xavier bound is
    # symmetric in (fan_in, fan_out) so the distribution matches PyTorch.
    return {
        "w1": _xavier_uniform(k1, (Cm, Cm)),
        "b1": jnp.zeros((1, Cm), jnp.float32),
        "w2": _xavier_uniform(k2, (Cm, 2 * D)),
        "b2": jnp.zeros((1, 2 * D), jnp.float32),
        "wo": _xavier_uniform(k3, (D, D)),
        "bo": jnp.zeros((1, D), jnp.float32),
    }


def ref_forward(x, c, params, *, batch):
    """Pure-JAX f32 reference mirroring the PyTorch module."""
    B = batch
    BS, T, D = x.shape
    S = BS // B
    xb = x.reshape(B, S, T, D)
    cc = c[:, None, :T, :]                               # (B, 1, T, Cm)
    h = cc @ params["w1"] + params["b1"]
    h = h * jax.nn.sigmoid(h)
    mod = h @ params["w2"] + params["b2"]
    shift, scale = jnp.split(mod, 2, axis=-1)
    mean = xb.mean(-1, keepdims=True)
    var = ((xb - mean) ** 2).mean(-1, keepdims=True)
    xn = (xb - mean) * jax.lax.rsqrt(var + 1e-6)
    xm = xn * (1.0 + scale) + shift
    out = xm @ params["wo"] + params["bo"]
    return out.reshape(BS, T, D)


if __name__ == "__main__":
    B, S, T = 2, 4, 16          # x enters as (B*S, T, D)
    Cm, D = 128, 128            # model_channels, out_channels (lane-dense)
    Tc = 24                     # conditioning has more tokens than T; windowed to T

    key = jax.random.PRNGKey(0)
    kx, kc, kp = jax.random.split(key, 3)
    x = jax.random.normal(kx, (B * S, T, D), jnp.float32)
    c = jax.random.normal(kc, (B, Tc, Cm), jnp.float32)
    params = init_params(kp, Cm, D)

    fwd = jax.jit(functools.partial(modulate_layer_forward, batch=B))
    out = fwd(x, c, params)
    jax.block_until_ready(out)

    expected = ref_forward(x, c, params, batch=B)
    assert out.shape == (B * S, T, D)
    # bf16 MXU operands (f32 accumulation) vs the pure-f32 reference: allow
    # small drift — observed max abs error is ~1e-3 at these shapes.
    assert jnp.allclose(out, expected, atol=1e-2, rtol=1e-2), (
        "mismatch vs reference, max abs err = %g"
        % float(jnp.max(jnp.abs(out - expected))))

    print("KERNEL_OK")
</pallas_src>

<mosaic_0001>
module attributes {stable_mosaic.version = 11 : i64} {
  func.func @_modulate_kernel(%arg0: i32, %arg1: i32, %arg2: memref<1x4x16x128xf32, #tpu.memory_space<vmem>>, %arg3: memref<1x16x128xf32, #tpu.memory_space<vmem>>, %arg4: memref<128x128xbf16, #tpu.memory_space<vmem>>, %arg5: memref<1x128xf32, #tpu.memory_space<vmem>>, %arg6: memref<128x128xbf16, #tpu.memory_space<vmem>>, %arg7: memref<128x128xbf16, #tpu.memory_space<vmem>>, %arg8: memref<1x128xf32, #tpu.memory_space<vmem>>, %arg9: memref<1x128xf32, #tpu.memory_space<vmem>>, %arg10: memref<128x128xbf16, #tpu.memory_space<vmem>>, %arg11: memref<1x128xf32, #tpu.memory_space<vmem>>, %arg12: memref<1x4x16x128xf32, #tpu.memory_space<vmem>>, %arg13: memref<16x128xf32, #tpu.memory_space<vmem>>, %arg14: memref<16x128xf32, #tpu.memory_space<vmem>>) attributes {dimension_semantics = [#tpu.dimension_semantics<parallel>, #tpu.dimension_semantics<arbitrary>], iteration_bounds = array<i64: 2, 1>, scalar_prefetch = 0 : i64, scratch_operands = 2 : i64, tpu.core_type = #tpu.core_type<tc>, window_params = [{transform_indices = @transform_0, window_bounds = array<i64: 1, 4, 16, 128>}, {transform_indices = @transform_1, window_bounds = array<i64: 1, 16, 128>}, {pipeline_mode = #tpu.pipeline_mode<synchronous>, transform_indices = @transform_2, window_bounds = array<i64: 128, 128>}, {pipeline_mode = #tpu.pipeline_mode<synchronous>, transform_indices = @transform_3, window_bounds = array<i64: 1, 128>}, {pipeline_mode = #tpu.pipeline_mode<synchronous>, transform_indices = @transform_4, window_bounds = array<i64: 128, 128>}, {pipeline_mode = #tpu.pipeline_mode<synchronous>, transform_indices = @transform_5, window_bounds = array<i64: 128, 128>}, {pipeline_mode = #tpu.pipeline_mode<synchronous>, transform_indices = @transform_6, window_bounds = array<i64: 1, 128>}, {pipeline_mode = #tpu.pipeline_mode<synchronous>, transform_indices = @transform_7, window_bounds = array<i64: 1, 128>}, {pipeline_mode = #tpu.pipeline_mode<synchronous>, transform_indices = @transform_8, window_bounds = array<i64: 128, 128>}, {pipeline_mode = #tpu.pipeline_mode<synchronous>, transform_indices = @transform_9, window_bounds = array<i64: 1, 128>}, {transform_indices = @transform_10, window_bounds = array<i64: 1, 4, 16, 128>}]} {
    %c0_i32 = arith.constant 0 : i32
    %0 = arith.cmpi eq, %arg1, %c0_i32 : i32
    %1 = arith.extui %0 : i1 to i32
    %c0_i32_0 = arith.constant 0 : i32
    %2 = arith.cmpi ne, %1, %c0_i32_0 : i32
    scf.if %2 {
      %c0_22 = arith.constant 0 : index
      %c0_23 = arith.constant 0 : index
      %c0_24 = arith.constant 0 : index
      %42 = vector.load %arg3[%c0_22, %c0_23, %c0_24] : memref<1x16x128xf32, #tpu.memory_space<vmem>>, vector<1x16x128xf32>
      %43 = vector.shape_cast %42 : vector<1x16x128xf32> to vector<16x128xf32>
      %44 = arith.truncf %43 : vector<16x128xf32> to vector<16x128xbf16>
      %c0_25 = arith.constant 0 : index
      %c0_26 = arith.constant 0 : index
      %45 = vector.load %arg4[%c0_25, %c0_26] : memref<128x128xbf16, #tpu.memory_space<vmem>>, vector<128x128xbf16>
      %cst_27 = arith.constant dense<0.000000e+00> : vector<16x128xf32>
      %46 = tpu.matmul %44, %45, %cst_27 {dimension_numbers = #tpu.dot_dimension_numbers<[1], [0], [0], [1], [0, 0, 1, 1], [], []>} : vector<16x128xbf16>, vector<128x128xbf16>, vector<16x128xf32> -> vector<16x128xf32>
      %c0_28 = arith.constant 0 : index
      %c0_29 = arith.constant 0 : index
      %47 = vector.load %arg5[%c0_28, %c0_29] : memref<1x128xf32, #tpu.memory_space<vmem>>, vector<1x128xf32>
      %48 = vector.broadcast %47 : vector<1x128xf32> to vector<16x128xf32>
      %49 = arith.addf %46, %48 : vector<16x128xf32>
      %50 = arith.negf %49 : vector<16x128xf32>
      %51 = math.exp %50 : vector<16x128xf32>
      %cst_30 = arith.constant 1.000000e+00 : f32
      %52 = vector.broadcast %cst_30 : f32 to vector<16x128xf32>
      %53 = arith.addf %52, %51 : vector<16x128xf32>
      %54 = arith.divf %52, %53 : vector<16x128xf32>
      %55 = arith.mulf %49, %54 : vector<16x128xf32>
      %56 = arith.truncf %55 : vector<16x128xf32> to vector<16x128xbf16>
      %c0_31 = arith.constant 0 : index
      %c0_32 = arith.constant 0 : index
      %57 = vector.load %arg6[%c0_31, %c0_32] : memref<128x128xbf16, #tpu.memory_space<vmem>>, vector<128x128xbf16>
      %cst_33 = arith.constant dense<0.000000e+00> : vector<16x128xf32>
      %58 = tpu.matmul %56, %57, %cst_33 {dimension_numbers = #tpu.dot_dimension_numbers<[1], [0], [0], [1], [0, 0, 1, 1], [], []>} : vector<16x128xbf16>, vector<128x128xbf16>, vector<16x128xf32> -> vector<16x128xf32>
      %c0_34 = arith.constant 0 : index
      %c0_35 = arith.constant 0 : index
      %59 = vector.load %arg8[%c0_34, %c0_35] : memref<1x128xf32, #tpu.memory_space<vmem>>, vector<1x128xf32>
      %60 = vector.broadcast %59 : vector<1x128xf32> to vector<16x128xf32>
      %61 = arith.addf %58, %60 : vector<16x128xf32>
      %c0_36 = arith.constant 0 : index
      %c0_37 = arith.constant 0 : index
      %62 = vector.load %arg13[%c0_36, %c0_37] : memref<16x128xf32, #tpu.memory_space<vmem>>, vector<16x128xf32>
      tpu.vector_store %arg13[%c0_36, %c0_37], %61 {strides = array<i32>} : memref<16x128xf32, #tpu.memory_space<vmem>>, vector<16x128xf32>,
      %c0_38 = arith.constant 0 : index
      %c0_39 = arith.constant 0 : index
      %63 = vector.load %arg7[%c0_38, %c0_39] : memref<128x128xbf16, #tpu.memory_space<vmem>>, vector<128x128xbf16>
      %cst_40 = arith.constant dense<0.000000e+00> : vector<16x128xf32>
      %64 = tpu.matmul %56, %63, %cst_40 {dimension_numbers = #tpu.dot_dimension_numbers<[1], [0], [0], [1], [0, 0, 1, 1], [], []>} : vector<16x128xbf16>, vector<128x128xbf16>, vector<16x128xf32> -> vector<16x128xf32>
      %c0_41 = arith.constant 0 : index
      %c0_42 = arith.constant 0 : index
      %65 = vector.load %arg9[%c0_41, %c0_42] : memref<1x128xf32, #tpu.memory_space<vmem>>, vector<1x128xf32>
      %66 = vector.broadcast %65 : vector<1x128xf32> to vector<16x128xf32>
      %67 = arith.addf %64, %66 : vector<16x128xf32>
      %c0_43 = arith.constant 0 : index
      %c0_44 = arith.constant 0 : index
      %68 = vector.load %arg14[%c0_43, %c0_44] : memref<16x128xf32, #tpu.memory_space<vmem>>, vector<16x128xf32>
      tpu.vector_store %arg14[%c0_43, %c0_44], %67 {strides = array<i32>} : memref<16x128xf32, #tpu.memory_space<vmem>>, vector<16x128xf32>,
    } else {
    }
    %c0 = arith.constant 0 : index
    %c0_1 = arith.constant 0 : index
    %c0_2 = arith.constant 0 : index
    %c0_3 = arith.constant 0 : index
    %3 = vector.load %arg2[%c0, %c0_1, %c0_2, %c0_3] : memref<1x4x16x128xf32, #tpu.memory_space<vmem>>, vector<1x4x16x128xf32>
    %4 = vector.shape_cast %3 : vector<1x4x16x128xf32> to vector<4x16x128xf32>
    %cst = arith.constant dense<0.000000e+00> : vector<4x16xf32>
    %5 = vector.multi_reduction <add>, %4, %cst [2] : vector<4x16x128xf32> to vector<4x16xf32>
    %6 = vector.shape_cast %5 : vector<4x16xf32> to vector<4x16x1xf32>
    %cst_4 = arith.constant 1.280000e+02 : f32
    %7 = vector.broadcast %cst_4 : f32 to vector<4x16x1xf32>
    %8 = arith.divf %6, %7 : vector<4x16x1xf32>
    %9 = vector.broadcast %8 : vector<4x16x1xf32> to vector<4x16x128xf32>
    %10 = arith.subf %4, %9 : vector<4x16x128xf32>
    %11 = arith.mulf %10, %10 : vector<4x16x128xf32>
    %cst_5 = arith.constant dense<0.000000e+00> : vector<4x16xf32>
    %12 = vector.multi_reduction <add>, %11, %cst_5 [2] : vector<4x16x128xf32> to vector<4x16xf32>
    %13 = vector.shape_cast %12 : vector<4x16xf32> to vector<4x16x1xf32>
    %cst_6 = arith.constant 1.280000e+02 : f32
    %14 = vector.broadcast %cst_6 : f32 to vector<4x16x1xf32>
    %15 = arith.divf %13, %14 : vector<4x16x1xf32>
    %cst_7 = arith.constant 9.99999997E-7 : f32
    %16 = vector.broadcast %cst_7 : f32 to vector<4x16x1xf32>
    %17 = arith.addf %15, %16 : vector<4x16x1xf32>
    %18 = math.rsqrt %17 : vector<4x16x1xf32>
    %19 = vector.broadcast %18 : vector<4x16x1xf32> to vector<4x16x128xf32>
    %20 = arith.mulf %10, %19 : vector<4x16x128xf32>
    %c0_8 = arith.constant 0 : index
    %c0_9 = arith.constant 0 : index
    %21 = vector.load %arg14[%c0_8, %c0_9] : memref<16x128xf32, #tpu.memory_space<vmem>>, vector<16x128xf32>
    %cst_10 = arith.constant 1.000000e+00 : f32
    %22 = vector.broadcast %cst_10 : f32 to vector<16x128xf32>
    %23 = arith.addf %22, %21 : vector<16x128xf32>
    %24 = vector.shape_cast %23 : vector<16x128xf32> to vector<1x16x128xf32>
    %25 = vector.broadcast %24 : vector<1x16x128xf32> to vector<4x16x128xf32>
    %26 = arith.mulf %20, %25 : vector<4x16x128xf32>
    %c0_11 = arith.constant 0 : index
    %c0_12 = arith.constant 0 : index
    %27 = vector.load %arg13[%c0_11, %c0_12] : memref<16x128xf32, #tpu.memory_space<vmem>>, vector<16x128xf32>
    %28 = vector.shape_cast %27 : vector<16x128xf32> to vector<1x16x128xf32>
    %29 = vector.broadcast %28 : vector<1x16x128xf32> to vector<4x16x128xf32>
    %30 = arith.addf %26, %29 : vector<4x16x128xf32>
    %31 = vector.shape_cast %30 : vector<4x16x128xf32> to vector<64x128xf32>
    %32 = arith.truncf %31 : vector<64x128xf32> to vector<64x128xbf16>
    %c0_13 = arith.constant 0 : index
    %c0_14 = arith.constant 0 : index
    %33 = vector.load %arg10[%c0_13, %c0_14] : memref<128x128xbf16, #tpu.memory_space<vmem>>, vector<128x128xbf16>
    %cst_15 = arith.constant dense<0.000000e+00> : vector<64x128xf32>
    %34 = tpu.matmul %32, %33, %cst_15 {dimension_numbers = #tpu.dot_dimension_numbers<[1], [0], [0], [1], [0, 0, 1, 1], [], []>} : vector<64x128xbf16>, vector<128x128xbf16>, vector<64x128xf32> -> vector<64x128xf32>
    %c0_16 = arith.constant 0 : index
    %c0_17 = arith.constant 0 : index
    %35 = vector.load %arg11[%c0_16, %c0_17] : memref<1x128xf32, #tpu.memory_space<vmem>>, vector<1x128xf32>
    %36 = vector.broadcast %35 : vector<1x128xf32> to vector<64x128xf32>
    %37 = arith.addf %34, %36 : vector<64x128xf32>
    %38 = vector.shape_cast %37 : vector<64x128xf32> to vector<4x16x128xf32>
    %c0_18 = arith.constant 0 : index
    %c0_19 = arith.constant 0 : index
    %c0_20 = arith.constant 0 : index
    %c0_21 = arith.constant 0 : index
    %39 = vector.load %arg12[%c0_18, %c0_19, %c0_20, %c0_21] : memref<1x4x16x128xf32, #tpu.memory_space<vmem>>, vector<1x4x16x128xf32>
    %40 = vector.shape_cast %39 : vector<1x4x16x128xf32> to vector<4x16x128xf32>
    %41 = vector.shape_cast %38 : vector<4x16x128xf32> to vector<1x4x16x128xf32>
    tpu.vector_store %arg12[%c0_18, %c0_19, %c0_20, %c0_21], %41 {strides = array<i32>} : memref<1x4x16x128xf32, #tpu.memory_space<vmem>>, vector<1x4x16x128xf32>,
    return
  }
  func.func @transform_0(%arg0: i32, %arg1: i32) -> (i32, i32, i32, i32) {
    %c0_i32 = arith.constant 0 : i32
    %c0_i32_0 = arith.constant 0 : i32
    %c0_i32_1 = arith.constant 0 : i32
    return %arg0, %arg1, %c0_i32, %c0_i32_0 : i32, i32, i32, i32
  }
  func.func @transform_1(%arg0: i32, %arg1: i32) -> (i32, i32, i32) {
    %c0_i32 = arith.constant 0 : i32
    %c0_i32_0 = arith.constant 0 : i32
    %c0_i32_1 = arith.constant 0 : i32
    return %arg0, %c0_i32, %c0_i32_0 : i32, i32, i32
  }
  func.func @transform_2(%arg0: i32, %arg1: i32) -> (i32, i32) {
    %c0_i32 = arith.constant 0 : i32
    %c0_i32_0 = arith.constant 0 : i32
    %c0_i32_1 = arith.constant 0 : i32
    return %c0_i32, %c0_i32_0 : i32, i32
  }
  func.func @transform_3(%arg0: i32, %arg1: i32) -> (i32, i32) {
    %c0_i32 = arith.constant 0 : i32
    %c0_i32_0 = arith.constant 0 : i32
    %c0_i32_1 = arith.constant 0 : i32
    return %c0_i32, %c0_i32_0 : i32, i32
  }
  func.func @transform_4(%arg0: i32, %arg1: i32) -> (i32, i32) {
    %c0_i32 = arith.constant 0 : i32
    %c0_i32_0 = arith.constant 0 : i32
    %c0_i32_1 = arith.constant 0 : i32
    return %c0_i32, %c0_i32_0 : i32, i32
  }
  func.func @transform_5(%arg0: i32, %arg1: i32) -> (i32, i32) {
    %c0_i32 = arith.constant 0 : i32
    %c0_i32_0 = arith.constant 0 : i32
    %c0_i32_1 = arith.constant 0 : i32
    return %c0_i32, %c0_i32_0 : i32, i32
  }
  func.func @transform_6(%arg0: i32, %arg1: i32) -> (i32, i32) {
    %c0_i32 = arith.constant 0 : i32
    %c0_i32_0 = arith.constant 0 : i32
    %c0_i32_1 = arith.constant 0 : i32
    return %c0_i32, %c0_i32_0 : i32, i32
  }
  func.func @transform_7(%arg0: i32, %arg1: i32) -> (i32, i32) {
    %c0_i32 = arith.constant 0 : i32
    %c0_i32_0 = arith.constant 0 : i32
    %c0_i32_1 = arith.constant 0 : i32
    return %c0_i32, %c0_i32_0 : i32, i32
  }
  func.func @transform_8(%arg0: i32, %arg1: i32) -> (i32, i32) {
    %c0_i32 = arith.constant 0 : i32
    %c0_i32_0 = arith.constant 0 : i32
    %c0_i32_1 = arith.constant 0 : i32
    return %c0_i32, %c0_i32_0 : i32, i32
  }
  func.func @transform_9(%arg0: i32, %arg1: i32) -> (i32, i32) {
    %c0_i32 = arith.constant 0 : i32
    %c0_i32_0 = arith.constant 0 : i32
    %c0_i32_1 = arith.constant 0 : i32
    return %c0_i32, %c0_i32_0 : i32, i32
  }
  func.func @transform_10(%arg0: i32, %arg1: i32) -> (i32, i32, i32, i32) {
    %c0_i32 = arith.constant 0 : i32
    %c0_i32_0 = arith.constant 0 : i32
    %c0_i32_1 = arith.constant 0 : i32
    return %arg0, %arg1, %c0_i32, %c0_i32_0 : i32, i32, i32, i32
  }
}

</mosaic_0001>

<llo_original>
// kernel: modulate_layer_forward.1
$region0: #{modulate_layer_forward.1}
  #allocation0 [shape = 'u32[]', space=smem, size = 0x4, offset = 0x4, fixed_abs, tag = 'smem constant byte address 0x4 - core index']
  #allocation1 [shape = 'u32[144,128]{1,0:T(1,128)}', space=vmem, size = 0x12000, scoped, tag = 'internal scratch']
  #allocation2 [shape = 'f32[16,128]{1,0:T(8,128)}', space=vmem, size = 0x2000, scoped, tag = 'scratch operand']
  #allocation3 [shape = 'f32[16,128]{1,0:T(8,128)}', space=vmem, size = 0x2000, scoped, tag = 'scratch operand']
  %s0 = inlined_call_operand.vmem [shape: f32[2,4,16,128], index: 0, kind: input, shape index: {}]
  %s1 = inlined_call_operand.vmem [shape: f32[2,24,128], index: 1, kind: input, shape index: {}]
  %s2 = inlined_call_operand.vmem [shape: bf16[128,128], index: 2, kind: input, shape index: {}]
  %s3 = inlined_call_operand.vmem [shape: f32[1,128], index: 3, kind: input, shape index: {}]
  %s4 = inlined_call_operand.vmem [shape: bf16[128,128], index: 4, kind: input, shape index: {}]
  %s5 = inlined_call_operand.vmem [shape: bf16[128,128], index: 5, kind: input, shape index: {}]
  %s6 = inlined_call_operand.vmem [shape: f32[1,128], index: 6, kind: input, shape index: {}]
  %s7 = inlined_call_operand.vmem [shape: f32[1,128], index: 7, kind: input, shape index: {}]
  %s8 = inlined_call_operand.vmem [shape: bf16[128,128], index: 8, kind: input, shape index: {}]
  %s9 = inlined_call_operand.vmem [shape: f32[1,128], index: 9, kind: input, shape index: {}]
  %s10 = inlined_call_operand.hbm [shape: f32[2,4,16,128], index: 10, kind: output, shape index: {}]
  %s11 = sld [smem:[#allocation0]]
  $region77: #{modulate_layer_forward.1} parent=0
    _
  %s13 = ssub.s32 1, %s11
  %s14 = scalar_select 0, %s13, %s11
  $region1: #{modulate_layer_forward.1} parent=0
    #allocation4 [shape = 'u8[65536]{0}', space=vmem, size = 0x10000, scoped, tag = 'output window, operand 0']
    #allocation5 [shape = 's32[2]{0}', space=sflag, size = 0x8, scoped, tag = 'scoped memory for modulate_layer_forward.1']
    %15 = vsyncpa [#allocation5], 0
    %s16 = scalar_lea.sflag [#allocation5], 1
    %17 = vsyncpa %s16, 0
    loop: start=0, step=1, limit=4
    $region2: #{modulate_layer_forward.1} parent=1 // loop_pre_header
      _
    $region3: #{modulate_layer_forward.1} parent=1 // loop_header
      %s19 = sphi 0, %s23
      %p20 = scmp.ge.s32.totalorder %s19, 4
      %s26 = sphi 0, %s38
      %s27 = sphi 0, %s34
      %s28 = sphi 0, %s26
      %s29 = sphi 0, %s27
      %s30 = sphi 0, %s28
      %s31 = sphi 0, %s29
      %s43 = sphi 0, %s45
      %s46 = sphi 0, %s43
      %s47 = sphi 0, %s46
      %s63 = sphi 0, %s47
      %s69 = sphi 0, %s71
      %s72 = sphi 0, %s69
      %s73 = sphi 0, %s72
      %s89 = sphi 0, %s73
      %s93 = sphi 0, %s93
      %s95 = sphi 0, %s93
      %s96 = sphi 0, %s95
      %s110 = sphi 0, %s96
      %s114 = sphi 0, %s114
      %s116 = sphi 0, %s114
      %s117 = sphi 0, %s116
      %s131 = sphi 0, %s117
      %s135 = sphi 0, %s135
      %s137 = sphi 0, %s135
      %s138 = sphi 0, %s137
      %s152 = sphi 0, %s138
      %s156 = sphi 0, %s156
      %s158 = sphi 0, %s156
      %s159 = sphi 0, %s158
      %s173 = sphi 0, %s159
      %s177 = sphi 0, %s177
      %s179 = sphi 0, %s177
      %s180 = sphi 0, %s179
      %s194 = sphi 0, %s180
      %s198 = sphi 0, %s198
      %s200 = sphi 0, %s198
      %s201 = sphi 0, %s200
      %s215 = sphi 0, %s201
      %s219 = sphi 0, %s219
      %s221 = sphi 0, %s219
      %s222 = sphi 0, %s221
      %s236 = sphi 0, %s222
      %s240 = sphi 0, %s240
      %s242 = sphi 0, %s240
      %s243 = sphi 0, %s242
      %s257 = sphi 0, %s243
      %s265 = sphi 0, %s267
      %s268 = sphi 0, %s265
      %s269 = sphi 0, %s268
      %s285 = sphi 0, %s269
    $region4: #{modulate_layer_forward.1} parent=1 // loop_header_branch
      %22 = sbr.rel (%p20) target = $region8
    $region5: #{modulate_layer_forward.1} parent=1 // loop_body
      %s24 = ssub.s32 %s19, 1
      %s25 = ssub.s32 %s19, 2
      %s32 = sadd.s32 1, %s27
      %p33 = scmp.ge.s32.totalorder %s32, 1
      %s34 = scalar_select %p33, 0, %s32
      %s35 = sadd.s32 1, %s26
      %s36 = scalar_select %p33, %s35, %s26
      %p37 = scmp.ge.s32.totalorder %s36, 2
      %s38 = scalar_select %p37, 0, %s36
      %s39 = ssub.s32 %s26, %s38
      %s40 = ssub.s32 %s27, %s34
      %s41 = sor.u32 %s39, %s40
      %p42 = scmp.eq.s32.totalorder %s41, 0
      %s44 = sadd.s32 %s43, 1
      %s45 = scalar_select %p42, %s43, %s44
      %p48 = pneg %p42
      %p49 = scmp.eq.s32.totalorder %s19, 1
      %p50 = por %p48, %p49
      %p51 = scmp.ne.s32.totalorder %s43, %s46
      %p52 = scmp.eq.s32.totalorder %s19, 0
      %p53 = por %p51, %p52
      %p54 = scmp.ne.s32.totalorder %s43, %s46
      %p55 = scmp.eq.s32.totalorder %s24, 1
      %p56 = por %p54, %p55
      %p57 = scmp.ne.s32.totalorder %s46, %s47
      %p58 = scmp.eq.s32.totalorder %s24, 0
      %p59 = por %p57, %p58
      %p60 = scmp.ne.s32.totalorder %s46, %s47
      %p61 = scmp.eq.s32.totalorder %s25, 1
      %p62 = por %p60, %p61
      %p64 = scmp.ne.s32.totalorder %s47, %s63
      %p65 = scmp.eq.s32.totalorder %s25, 0
      %p66 = por %p64, %p65
      %s67 = ssub.s32 %s26, %s38
      %p68 = scmp.eq.s32.totalorder %s67, 0
      %s70 = sadd.s32 %s69, 1
      %s71 = scalar_select %p68, %s69, %s70
      %p74 = pneg %p68
      %p75 = scmp.eq.s32.totalorder %s19, 1
      %p76 = por %p74, %p75
      %p77 = scmp.ne.s32.totalorder %s69, %s72
      %p78 = scmp.eq.s32.totalorder %s19, 0
      %p79 = por %p77, %p78
      %p80 = scmp.ne.s32.totalorder %s69, %s72
      %p81 = scmp.eq.s32.totalorder %s24, 1
      %p82 = por %p80, %p81
      %p83 = scmp.ne.s32.totalorder %s72, %s73
      %p84 = scmp.eq.s32.totalorder %s24, 0
      %p85 = por %p83, %p84
      %p86 = scmp.ne.s32.totalorder %s72, %s73
      %p87 = scmp.eq.s32.totalorder %s25, 1
      %p88 = por %p86, %p87
      %p90 = scmp.ne.s32.totalorder %s73, %s89
      %p91 = scmp.eq.s32.totalorder %s25, 0
      %p92 = por %p90, %p91
      %s94 = sadd.s32 %s93, 1
      %p97 = scmp.eq.s32.totalorder %s19, 1
      %p98 = scmp.ne.s32.totalorder %s93, %s95
      %p99 = scmp.eq.s32.totalorder %s19, 0
      %p100 = por %p98, %p99
      %p101 = scmp.ne.s32.totalorder %s93, %s95
      %p102 = scmp.eq.s32.totalorder %s24, 1
      %p103 = por %p101, %p102
      %p104 = scmp.ne.s32.totalorder %s95, %s96
      %p105 = scmp.eq.s32.totalorder %s24, 0
      %p106 = por %p104, %p105
      %p107 = scmp.ne.s32.totalorder %s95, %s96
      %p108 = scmp.eq.s32.totalorder %s25, 1
      %p109 = por %p107, %p108
      %p111 = scmp.ne.s32.totalorder %s96, %s110
      %p112 = scmp.eq.s32.totalorder %s25, 0
      %p113 = por %p111, %p112
      %s115 = sadd.s32 %s114, 1
      %p118 = scmp.eq.s32.totalorder %s19, 1
      %p119 = scmp.ne.s32.totalorder %s114, %s116
      %p120 = scmp.eq.s32.totalorder %s19, 0
      %p121 = por %p119, %p120
      %p122 = scmp.ne.s32.totalorder %s114, %s116
      %p123 = scmp.eq.s32.totalorder %s24, 1
      %p124 = por %p122, %p123
      %p125 = scmp.ne.s32.totalorder %s116, %s117
      %p126 = scmp.eq.s32.totalorder %s24, 0
      %p127 = por %p125, %p126
      %p128 = scmp.ne.s32.totalorder %s116, %s117
      %p129 = scmp.eq.s32.totalorder %s25, 1
      %p130 = por %p128, %p129
      %p132 = scmp.ne.s32.totalorder %s117, %s131
      %p133 = scmp.eq.s32.totalorder %s25, 0
      %p134 = por %p132, %p133
      %s136 = sadd.s32 %s135, 1
      %p139 = scmp.eq.s32.totalorder %s19, 1
      %p140 = scmp.ne.s32.totalorder %s135, %s137
      %p141 = scmp.eq.s32.totalorder %s19, 0
      %p142 = por %p140, %p141
      %p143 = scmp.ne.s32.totalorder %s135, %s137
      %p144 = scmp.eq.s32.totalorder %s24, 1
      %p145 = por %p143, %p144
      %p146 = scmp.ne.s32.totalorder %s137, %s138
      %p147 = scmp.eq.s32.totalorder %s24, 0
      %p148 = por %p146, %p147
      %p149 = scmp.ne.s32.totalorder %s137, %s138
      %p150 = scmp.eq.s32.totalorder %s25, 1
      %p151 = por %p149, %p150
      %p153 = scmp.ne.s32.totalorder %s138, %s152
      %p154 = scmp.eq.s32.totalorder %s25, 0
      %p155 = por %p153, %p154
      %s157 = sadd.s32 %s156, 1
      %p160 = scmp.eq.s32.totalorder %s19, 1
      %p161 = scmp.ne.s32.totalorder %s156, %s158
      %p162 = scmp.eq.s32.totalorder %s19, 0
      %p163 = por %p161, %p162
      %p164 = scmp.ne.s32.totalorder %s156, %s158
      %p165 = scmp.eq.s32.totalorder %s24, 1
      %p166 = por %p164, %p165
      %p167 = scmp.ne.s32.totalorder %s158, %s159
      %p168 = scmp.eq.s32.totalorder %s24, 0
      %p169 = por %p167, %p168
      %p170 = scmp.ne.s32.totalorder %s158, %s159
      %p171 = scmp.eq.s32.totalorder %s25, 1
      %p172 = por %p170, %p171
      %p174 = scmp.ne.s32.totalorder %s159, %s173
      %p175 = scmp.eq.s32.totalorder %s25, 0
      %p176 = por %p174, %p175
      %s178 = sadd.s32 %s177, 1
      %p181 = scmp.eq.s32.totalorder %s19, 1
      %p182 = scmp.ne.s32.totalorder %s177, %s179
      %p183 = scmp.eq.s32.totalorder %s19, 0
      %p184 = por %p182, %p183
      %p185 = scmp.ne.s32.totalorder %s177, %s179
      %p186 = scmp.eq.s32.totalorder %s24, 1
      %p187 = por %p185, %p186
      %p188 = scmp.ne.s32.totalorder %s179, %s180
      %p189 = scmp.eq.s32.totalorder %s24, 0
      %p190 = por %p188, %p189
      %p191 = scmp.ne.s32.totalorder %s179, %s180
      %p192 = scmp.eq.s32.totalorder %s25, 1
      %p193 = por %p191, %p192
      %p195 = scmp.ne.s32.totalorder %s180, %s194
      %p196 = scmp.eq.s32.totalorder %s25, 0
      %p197 = por %p195, %p196
      %s199 = sadd.s32 %s198, 1
      %p202 = scmp.eq.s32.totalorder %s19, 1
      %p203 = scmp.ne.s32.totalorder %s198, %s200
      %p204 = scmp.eq.s32.totalorder %s19, 0
      %p205 = por %p203, %p204
      %p206 = scmp.ne.s32.totalorder %s198, %s200
      %p207 = scmp.eq.s32.totalorder %s24, 1
      %p208 = por %p206, %p207
      %p209 = scmp.ne.s32.totalorder %s200, %s201
      %p210 = scmp.eq.s32.totalorder %s24, 0
      %p211 = por %p209, %p210
      %p212 = scmp.ne.s32.totalorder %s200, %s201
      %p213 = scmp.eq.s32.totalorder %s25, 1
      %p214 = por %p212, %p213
      %p216 = scmp.ne.s32.totalorder %s201, %s215
      %p217 = scmp.eq.s32.totalorder %s25, 0
      %p218 = por %p216, %p217
      %s220 = sadd.s32 %s219, 1
      %p223 = scmp.eq.s32.totalorder %s19, 1
      %p224 = scmp.ne.s32.totalorder %s219, %s221
      %p225 = scmp.eq.s32.totalorder %s19, 0
      %p226 = por %p224, %p225
      %p227 = scmp.ne.s32.totalorder %s219, %s221
      %p228 = scmp.eq.s32.totalorder %s24, 1
      %p229 = por %p227, %p228
      %p230 = scmp.ne.s32.totalorder %s221, %s222
      %p231 = scmp.eq.s32.totalorder %s24, 0
      %p232 = por %p230, %p231
      %p233 = scmp.ne.s32.totalorder %s221, %s222
      %p234 = scmp.eq.s32.totalorder %s25, 1
      %p235 = por %p233, %p234
      %p237 = scmp.ne.s32.totalorder %s222, %s236
      %p238 = scmp.eq.s32.totalorder %s25, 0
      %p239 = por %p237, %p238
      %s241 = sadd.s32 %s240, 1
      %p244 = scmp.eq.s32.totalorder %s19, 1
      %p245 = scmp.ne.s32.totalorder %s240, %s242
      %p246 = scmp.eq.s32.totalorder %s19, 0
      %p247 = por %p245, %p246
      %p248 = scmp.ne.s32.totalorder %s240, %s242
      %p249 = scmp.eq.s32.totalorder %s24, 1
      %p250 = por %p248, %p249
      %p251 = scmp.ne.s32.totalorder %s242, %s243
      %p252 = scmp.eq.s32.totalorder %s24, 0
      %p253 = por %p251, %p252
      %p254 = scmp.ne.s32.totalorder %s242, %s243
      %p255 = scmp.eq.s32.totalorder %s25, 1
      %p256 = por %p254, %p255
      %p258 = scmp.ne.s32.totalorder %s243, %s257
      %p259 = scmp.eq.s32.totalorder %s25, 0
      %p260 = por %p258, %p259
      %s261 = ssub.s32 %s26, %s38
      %s262 = ssub.s32 %s27, %s34
      %s263 = sor.u32 %s261, %s262
      %p264 = scmp.eq.s32.totalorder %s263, 0
      %s266 = sadd.s32 %s265, 1
      %s267 = scalar_select %p264, %s265, %s266
      %p270 = pneg %p264
      %p271 = scmp.eq.s32.totalorder %s19, 1
      %p272 = por %p270, %p271
      %p273 = scmp.ne.s32.totalorder %s265, %s268
      %p274 = scmp.eq.s32.totalorder %s19, 0
      %p275 = por %p273, %p274
      %p276 = scmp.ne.s32.totalorder %s265, %s268
      %p277 = scmp.eq.s32.totalorder %s24, 1
      %p278 = por %p276, %p277
      %p279 = scmp.ne.s32.totalorder %s268, %s269
      %p280 = scmp.eq.s32.totalorder %s24, 0
      %p281 = por %p279, %p280
      %p282 = scmp.ne.s32.totalorder %s268, %s269
      %p283 = scmp.eq.s32.totalorder %s25, 1
      %p284 = por %p282, %p283
      %p286 = scmp.ne.s32.totalorder %s269, %s285
      %p287 = scmp.eq.s32.totalorder %s25, 0
      %p288 = por %p286, %p287
      %p289 = scmp.le.s32.totalorder 1, %s19
      %p290 = scmp.lt.s32.totalorder %s19, 3
      %p291 = pnand %p289, %p290
      %p292 = pneg %p291
      // Predicated region
      $region9: #{modulate_layer_forward.1} parent=5 // pred_check
        _
      $region10: #{modulate_layer_forward.1} parent=5 // pred_check_branch
        %294 = sbr.rel (%p291) target = $region12
      $region11: #{modulate_layer_forward.1} parent=5 // pred_region
        %s295 = ssub.s32 %s19, 1
        // Predicated region
        $region13: #{modulate_layer_forward.1} parent=11 // pred_check
          %p296 = pneg %p106
        $region14: #{modulate_layer_forward.1} parent=11 // pred_check_branch
          %298 = sbr.rel (%p296) target = $region16
        $region15: #{modulate_layer_forward.1} parent=11 // pred_region
          _
        $region16: #{modulate_layer_forward.1} parent=11 // pred_fallthru
          _
        // Predicated region
        $region17: #{modulate_layer_forward.1} parent=11 // pred_check
          %p299 = pneg %p127
        $region18: #{modulate_layer_forward.1} parent=11 // pred_check_branch
          %301 = sbr.rel (%p299) target = $region20
        $region19: #{modulate_layer_forward.1} parent=11 // pred_region
          _
        $region20: #{modulate_layer_forward.1} parent=11 // pred_fallthru
          _
        // Predicated region
        $region21: #{modulate_layer_forward.1} parent=11 // pred_check
          %p302 = pneg %p148
        $region22: #{modulate_layer_forward.1} parent=11 // pred_check_branch
          %304 = sbr.rel (%p302) target = $region24
        $region23: #{modulate_layer_forward.1} parent=11 // pred_region
          _
        $region24: #{modulate_layer_forward.1} parent=11 // pred_fallthru
          _
        // Predicated region
        $region25: #{modulate_layer_forward.1} parent=11 // pred_check
          %p305 = pneg %p169
        $region26: #{modulate_layer_forward.1} parent=11 // pred_check_branch
          %307 = sbr.rel (%p305) target = $region28
        $region27: #{modulate_layer_forward.1} parent=11 // pred_region
          _
        $region28: #{modulate_layer_forward.1} parent=11 // pred_fallthru
          _
        // Predicated region
        $region29: #{modulate_layer_forward.1} parent=11 // pred_check
          %p308 = pneg %p190
        $region30: #{modulate_layer_forward.1} parent=11 // pred_check_branch
          %310 = sbr.rel (%p308) target = $region32
        $region31: #{modulate_layer_forward.1} parent=11 // pred_region
          _
        $region32: #{modulate_layer_forward.1} parent=11 // pred_fallthru
          _
        // Predicated region
        $region33: #{modulate_layer_forward.1} parent=11 // pred_check
          %p311 = pneg %p211
        $region34: #{modulate_layer_forward.1} parent=11 // pred_check_branch
          %313 = sbr.rel (%p311) target = $region36
        $region35: #{modulate_layer_forward.1} parent=11 // pred_region
          _
        $region36: #{modulate_layer_forward.1} parent=11 // pred_fallthru
          _
        // Predicated region
        $region37: #{modulate_layer_forward.1} parent=11 // pred_check
          %p314 = pneg %p232
        $region38: #{modulate_layer_forward.1} parent=11 // pred_check_branch
          %316 = sbr.rel (%p314) target = $region40
        $region39: #{modulate_layer_forward.1} parent=11 // pred_region
          _
        $region40: #{modulate_layer_forward.1} parent=11 // pred_fallthru
          _
        // Predicated region
        $region41: #{modulate_layer_forward.1} parent=11 // pred_check
          %p317 = pneg %p253
        $region42: #{modulate_layer_forward.1} parent=11 // pred_check_branch
          %319 = sbr.rel (%p317) target = $region44
        $region43: #{modulate_layer_forward.1} parent=11 // pred_region
          _
        $region44: #{modulate_layer_forward.1} parent=11 // pred_fallthru
          _
      $region12: #{modulate_layer_forward.1} parent=5 // pred_fallthru
        _
      %p320 = scmp.lt.s32.totalorder %s19, 2
      // Predicated region
      $region45: #{modulate_layer_forward.1} parent=5 // pred_check
        %p321 = pneg %p320
      $region46: #{modulate_layer_forward.1} parent=5 // pred_check_branch
        %323 = sbr.rel (%p321) target = $region48
      $region47: #{modulate_layer_forward.1} parent=5 // pred_region
        // Predicated region
        $region49: #{modulate_layer_forward.1} parent=47 // pred_check
          %p324 = pneg %p53
        $region50: #{modulate_layer_forward.1} parent=47 // pred_check_branch
          %326 = sbr.rel (%p324) target = $region52
        $region51: #{modulate_layer_forward.1} parent=47 // pred_region
          %s327 = smul.u32 4, %s27
          %p328 = scmp.lt.s32.totalorder %s26, 1
          %s329 = scalar_select %p328, %s26, 1
          %p330 = scmp.lt.s32.totalorder %s327, 3
          %s331 = scalar_select %p330, %s327, 3
          %s332 = smul.addr %s331, 2
          %s333 = smul.addr %s329, 8
          %s334 = sadd.s32 %s332, %s333
          %s335 = smul.addr %s334, 8
          %s336 = scalar_lea.vmem %s0, %s335
          %s337 = smul.u32 4, %s27
        $region52: #{modulate_layer_forward.1} parent=47 // pred_fallthru
          _
        // Predicated region
        $region53: #{modulate_layer_forward.1} parent=47 // pred_check
          %p338 = pneg %p79
        $region54: #{modulate_layer_forward.1} parent=47 // pred_check_branch
          %340 = sbr.rel (%p338) target = $region56
        $region55: #{modulate_layer_forward.1} parent=47 // pred_region
          %p341 = scmp.lt.s32.totalorder %s26, 1
          %s342 = scalar_select %p341, %s26, 1
          %s343 = smul.addr %s342, 3
          %s344 = smul.addr %s343, 8
          %s345 = scalar_lea.vmem %s1, %s344
        $region56: #{modulate_layer_forward.1} parent=47 // pred_fallthru
          _
      $region48: #{modulate_layer_forward.1} parent=5 // pred_fallthru
        _
      %p346 = scmp.le.s32.totalorder 1, %s19
      %p347 = scmp.lt.s32.totalorder %s19, 3
      %p348 = pnand %p346, %p347
      %p349 = pneg %p348
      // Predicated region
      $region57: #{modulate_layer_forward.1} parent=5 // pred_check
        _
      $region58: #{modulate_layer_forward.1} parent=5 // pred_check_branch
        %351 = sbr.rel (%p348) target = $region60
      $region59: #{modulate_layer_forward.1} parent=5 // pred_region
        %s352 = ssub.s32 %s19, 1
        %s353 = smul.u32 4, %s29
        %p354 = scmp.lt.s32.totalorder %s28, 1
        %s355 = scalar_select %p354, %s28, 1
        %p356 = scmp.lt.s32.totalorder %s353, 3
        %s357 = scalar_select %p356, %s353, 3
        %s358 = smul.addr %s357, 2
        %s359 = smul.addr %s355, 8
        %s360 = sadd.s32 %s358, %s359
        %s361 = smul.addr %s360, 8
        %s362 = scalar_lea.vmem %s0, %s361
        %p363 = pneg %p59
        %p364 = pneg %p56
        %p365 = scmp.lt.s32.totalorder %s28, 1
        %s366 = scalar_select %p365, %s28, 1
        %s367 = smul.addr %s366, 3
        %s368 = smul.addr %s367, 8
        %s369 = scalar_lea.vmem %s1, %s368
        %p370 = pneg %p85
        %p371 = pneg %p82
        %p372 = pneg %p106
        %p373 = pneg %p103
        %p374 = pneg %p127
        %p375 = pneg %p124
        %p376 = pneg %p148
        %p377 = pneg %p145
        %p378 = pneg %p169
        %p379 = pneg %p166
        %p380 = pneg %p190
        %p381 = pneg %p187
        %p382 = pneg %p211
        %p383 = pneg %p208
        %p384 = pneg %p232
        %p385 = pneg %p229
        %p386 = pneg %p253
        %p387 = pneg %p250
        %p388 = pneg %p281
        %p389 = pneg %p278
        %s390 = sand.u32 %s268, 1
        %s391 = scalar_lea.sflag [#allocation5], %s390
        %s392 = sand.u32 %s268, 1
        %s393 = smul.addr %s392, 64
        %s394 = scalar_lea.vmem [#allocation4], %s393
        %s395 = smul.u32 4, %s29
        %p396 = scmp.lt.s32.totalorder %s28, 1
        %s397 = scalar_select %p396, %s28, 1
        %p398 = scmp.lt.s32.totalorder %s395, 3
        %s399 = scalar_select %p398, %s395, 3
        %s400 = smul.addr %s399, 2
        %s401 = smul.addr %s397, 8
        %s402 = sadd.s32 %s400, %s401
        %s403 = smul.addr %s402, 8
        %s404 = scalar_lea.vmem %s0, %s403
        %s405 = smul.u32 4, %s29
        %p406 = scmp.lt.s32.totalorder %s28, 1
        %s407 = scalar_select %p406, %s28, 1
        %s408 = smul.addr %s407, 3
        %s409 = smul.addr %s408, 8
        %s410 = scalar_lea.vmem %s1, %s409
        %s411 = smul.u32 4, %s29
        %p413 = scmp.eq.s32.totalorder %s29, 0
        // Predicated region
        $region61: #{modulate_layer_forward.1} parent=59 // pred_check
          %p414 = pneg %p413
        $region62: #{modulate_layer_forward.1} parent=59 // pred_check_branch
          %416 = sbr.rel (%p414) target = $region64
        $region63: #{modulate_layer_forward.1} parent=59 // pred_region
          %v417 = vld [vmem:[%s410] sm:$0xff]
          %v418 = vld [vmem:[%s410 + $0x8] sm:$0xff]
          %v419 = vpack.c.bf16 %v418, %v417
          %v420 = vld [vmem:[%s2] sm:$0xf]
          %v421 = vld [vmem:[%s2 + $0x4] sm:$0xf]
          %v422 = vld [vmem:[%s2 + $0x8] sm:$0xf]
          %v423 = vld [vmem:[%s2 + $0xc] sm:$0xf]
          %v424 = vld [vmem:[%s2 + $0x10] sm:$0xf]
          %v425 = vld [vmem:[%s2 + $0x14] sm:$0xf]
          %v426 = vld [vmem:[%s2 + $0x18] sm:$0xf]
          %v427 = vld [vmem:[%s2 + $0x1c] sm:$0xf]
          %v428 = vld [vmem:[%s2 + $0x20] sm:$0xf]
          %v429 = vld [vmem:[%s2 + $0x24] sm:$0xf]
          %v430 = vld [vmem:[%s2 + $0x28] sm:$0xf]
          %v431 = vld [vmem:[%s2 + $0x2c] sm:$0xf]
          %v432 = vld [vmem:[%s2 + $0x30] sm:$0xf]
          %v433 = vld [vmem:[%s2 + $0x34] sm:$0xf]
          %v434 = vld [vmem:[%s2 + $0x38] sm:$0xf]
          %v435 = vld [vmem:[%s2 + $0x3c] sm:$0xf]
          %v436 = vld [vmem:[%s3] sm:$0x1]
          %v438 = vlaneseq
          %v439 = vshrl.u32 %v438, 7
          %v440 = vsub.s32 0, %v439
          %v441 = vrot.slane %v436, %v440
          %v459 = vunpack.c.l.b16 %v420
          %v460 = vunpack.c.l.b16 %v421
          %v461 = vunpack.c.l.b16 %v422
          %v462 = vunpack.c.l.b16 %v423
          %v463 = vunpack.c.l.b16 %v424
          %v464 = vunpack.c.l.b16 %v425
          %v465 = vunpack.c.l.b16 %v426
          %v466 = vunpack.c.l.b16 %v427
          %v467 = vunpack.c.l.b16 %v428
          %v468 = vunpack.c.l.b16 %v429
          %v469 = vunpack.c.l.b16 %v430
          %v470 = vunpack.c.l.b16 %v431
          %v471 = vunpack.c.l.b16 %v432
          %v472 = vunpack.c.l.b16 %v433
          %v473 = vunpack.c.l.b16 %v434
          %v474 = vunpack.c.l.b16 %v435
          %v475 = vpack.c.b16 %v460, %v459
          %v476 = vpack.c.b16 %v462, %v461
          %v477 = vpack.c.b16 %v464, %v463
          %v478 = vpack.c.b16 %v466, %v465
          %v479 = vpack.c.b16 %v468, %v467
          %v480 = vpack.c.b16 %v470, %v469
          %v481 = vpack.c.b16 %v472, %v471
          %v482 = vpack.c.b16 %v474, %v473
          %491 = vmatprep.subr.bf16.mxu0 0
          %492 = vmatpush1.bf16.msra.mxu0 %v475
          %493 = vmatprep.subr.bf16.mxu0 0
          %494 = vmatpush1.bf16.msra.mxu0 %v476
          %495 = vmatprep.subr.bf16.mxu0 0
          %496 = vmatpush1.bf16.msra.mxu0 %v477
          %497 = vmatprep.subr.bf16.mxu0 0
          %498 = vmatpush1.bf16.msra.mxu0 %v478
          %499 = vmatprep.subr.bf16.mxu0 0
          %500 = vmatpush1.bf16.msra.mxu0 %v479
          %501 = vmatprep.subr.bf16.mxu0 0
          %502 = vmatpush1.bf16.msra.mxu0 %v480
          %503 = vmatprep.subr.bf16.mxu0 0
          %504 = vmatpush1.bf16.msra.mxu0 %v481
          %505 = vmatprep.subr.bf16.mxu0 0
          %506 = vmatpush1.bf16.msra.mxu0 %v482
          %507 = vmatprep.subr.bf16.mxu0 0
          %508 = vmatpush1.bf16.msra.mxu0 0
          %509 = vmatprep.subr.bf16.mxu0 0
          %510 = vmatpush1.bf16.msra.mxu0 0
          %511 = vmatprep.subr.bf16.mxu0 0
          %512 = vmatpush1.bf16.msra.mxu0 0
          %513 = vmatprep.subr.bf16.mxu0 0
          %514 = vmatpush1.bf16.msra.mxu0 0
          %515 = vmatprep.subr.bf16.mxu0 0
          %516 = vmatpush1.bf16.msra.mxu0 0
          %517 = vmatprep.subr.bf16.mxu0 0
          %518 = vmatpush1.bf16.msra.mxu0 0
          %519 = vmatprep.subr.bf16.mxu0 0
          %520 = vmatpush1.bf16.msra.mxu0 0
          %521 = vmatprep.subr.bf16.mxu0 0
          %522 = vmatpush1.bf16.msra.mxu0 0
          %523 = vmatprep.mubr.bf16.mxu0 0
          %524 = vmatmul.mubr.bf16.gmra.mrb[0].mxu0 %v419
          %v525 = vpop.f32.mrb[0].mxu0
          %v526 = vadd.f32 %v441, %v525
          %v527 = vpop.f32.mrb[0].mxu0
          %v528 = vpop.f32.mrb[0].mxu0
          %v529 = vadd.f32 %v441, %v528
          %v530 = vpop.f32.mrb[0].mxu0
          %531 = vdwg.mxu0
          %v532 = vxor.u32 %v526, 2147483648
          %v533 = vxor.u32 %v529, 2147483648
          %v534 = vmul.f32 %v532, 1.442695
          %v535 = vpow.pop %v534
          %v536 = vmul.f32 %v533, 1.442695
          %v537 = vpow.pop %v536
          %v538 = vadd.f32 %v535, 1.0
          %v539 = vadd.f32 %v537, 1.0
          %v540 = vrcp.pop %v538
          %v541 = vmul.f32 1.0, %v540
          %v542 = vrcp.pop %v539
          %v543 = vmul.f32 1.0, %v542
          %v544 = vmul.f32 %v526, %v541
          %v545 = vmul.f32 %v529, %v543
          %v546 = vpack.c.bf16 %v545, %v544
          %v547 = vld [vmem:[%s4] sm:$0xf]
          %v548 = vld [vmem:[%s4 + $0x4] sm:$0xf]
          %v549 = vld [vmem:[%s4 + $0x8] sm:$0xf]
          %v550 = vld [vmem:[%s4 + $0xc] sm:$0xf]
          %v551 = vld [vmem:[%s4 + $0x10] sm:$0xf]
          %v552 = vld [vmem:[%s4 + $0x14] sm:$0xf]
          %v553 = vld [vmem:[%s4 + $0x18] sm:$0xf]
          %v554 = vld [vmem:[%s4 + $0x1c] sm:$0xf]
          %v555 = vld [vmem:[%s4 + $0x20] sm:$0xf]
          %v556 = vld [vmem:[%s4 + $0x24] sm:$0xf]
          %v557 = vld [vmem:[%s4 + $0x28] sm:$0xf]
          %v558 = vld [vmem:[%s4 + $0x2c] sm:$0xf]
          %v559 = vld [vmem:[%s4 + $0x30] sm:$0xf]
          %v560 = vld [vmem:[%s4 + $0x34] sm:$0xf]
          %v561 = vld [vmem:[%s4 + $0x38] sm:$0xf]
          %v562 = vld [vmem:[%s4 + $0x3c] sm:$0xf]
          %v563 = vld [vmem:[%s6] sm:$0x1]
          %v565 = vlaneseq
          %v566 = vshrl.u32 %v565, 7
          %v567 = vsub.s32 0, %v566
          %v568 = vrot.slane %v563, %v567
          %v586 = vunpack.c.l.b16 %v547
          %v587 = vunpack.c.l.b16 %v548
          %v588 = vunpack.c.l.b16 %v549
          %v589 = vunpack.c.l.b16 %v550
          %v590 = vunpack.c.l.b16 %v551
          %v591 = vunpack.c.l.b16 %v552
          %v592 = vunpack.c.l.b16 %v553
          %v593 = vunpack.c.l.b16 %v554
          %v594 = vunpack.c.l.b16 %v555
          %v595 = vunpack.c.l.b16 %v556
          %v596 = vunpack.c.l.b16 %v557
          %v597 = vunpack.c.l.b16 %v558
          %v598 = vunpack.c.l.b16 %v559
          %v599 = vunpack.c.l.b16 %v560
          %v600 = vunpack.c.l.b16 %v561
          %v601 = vunpack.c.l.b16 %v562
          %v602 = vpack.c.b16 %v587, %v586
          %v603 = vpack.c.b16 %v589, %v588
          %v604 = vpack.c.b16 %v591, %v590
          %v605 = vpack.c.b16 %v593, %v592
          %v606 = vpack.c.b16 %v595, %v594
          %v607 = vpack.c.b16 %v597, %v596
          %v608 = vpack.c.b16 %v599, %v598
          %v609 = vpack.c.b16 %v601, %v600
          %618 = vmatprep.subr.bf16.mxu0 0
          %619 = vmatpush1.bf16.msra.mxu0 %v602
          %620 = vmatprep.subr.bf16.mxu0 0
          %621 = vmatpush1.bf16.msra.mxu0 %v603
          %622 = vmatprep.subr.bf16.mxu0 0
          %623 = vmatpush1.bf16.msra.mxu0 %v604
          %624 = vmatprep.subr.bf16.mxu0 0
          %625 = vmatpush1.bf16.msra.mxu0 %v605
          %626 = vmatprep.subr.bf16.mxu0 0
          %627 = vmatpush1.bf16.msra.mxu0 %v606
          %628 = vmatprep.subr.bf16.mxu0 0
          %629 = vmatpush1.bf16.msra.mxu0 %v607
          %630 = vmatprep.subr.bf16.mxu0 0
          %631 = vmatpush1.bf16.msra.mxu0 %v608
          %632 = vmatprep.subr.bf16.mxu0 0
          %633 = vmatpush1.bf16.msra.mxu0 %v609
          %634 = vmatprep.subr.bf16.mxu0 0
          %635 = vmatpush1.bf16.msra.mxu0 0
          %636 = vmatprep.subr.bf16.mxu0 0
          %637 = vmatpush1.bf16.msra.mxu0 0
          %638 = vmatprep.subr.bf16.mxu0 0
          %639 = vmatpush1.bf16.msra.mxu0 0
          %640 = vmatprep.subr.bf16.mxu0 0
          %641 = vmatpush1.bf16.msra.mxu0 0
          %642 = vmatprep.subr.bf16.mxu0 0
          %643 = vmatpush1.bf16.msra.mxu0 0
          %644 = vmatprep.subr.bf16.mxu0 0
          %645 = vmatpush1.bf16.msra.mxu0 0
          %646 = vmatprep.subr.bf16.mxu0 0
          %647 = vmatpush1.bf16.msra.mxu0 0
          %648 = vmatprep.subr.bf16.mxu0 0
          %649 = vmatpush1.bf16.msra.mxu0 0
          %650 = vmatprep.mubr.bf16.mxu0 0
          %651 = vmatmul.mubr.bf16.gmra.mrb[0].mxu0 %v546
          %v652 = vpop.f32.mrb[0].mxu0
          %v653 = vadd.f32 %v568, %v652
          %v654 = vpop.f32.mrb[0].mxu0
          %v655 = vpop.f32.mrb[0].mxu0
          %v656 = vadd.f32 %v568, %v655
          %v657 = vpop.f32.mrb[0].mxu0
          %658 = vdwg.mxu0
          %659 = vst [vmem:[#allocation2] sm:$0xff] %v653
          %660 = vst [vmem:[#allocation2 + $0x8] sm:$0xff] %v656
          %v661 = vld [vmem:[%s5] sm:$0xf]
          %v662 = vld [vmem:[%s5 + $0x4] sm:$0xf]
          %v663 = vld [vmem:[%s5 + $0x8] sm:$0xf]
          %v664 = vld [vmem:[%s5 + $0xc] sm:$0xf]
          %v665 = vld [vmem:[%s5 + $0x10] sm:$0xf]
          %v666 = vld [vmem:[%s5 + $0x14] sm:$0xf]
          %v667 = vld [vmem:[%s5 + $0x18] sm:$0xf]
          %v668 = vld [vmem:[%s5 + $0x1c] sm:$0xf]
          %v669 = vld [vmem:[%s5 + $0x20] sm:$0xf]
          %v670 = vld [vmem:[%s5 + $0x24] sm:$0xf]
          %v671 = vld [vmem:[%s5 + $0x28] sm:$0xf]
          %v672 = vld [vmem:[%s5 + $0x2c] sm:$0xf]
          %v673 = vld [vmem:[%s5 + $0x30] sm:$0xf]
          %v674 = vld [vmem:[%s5 + $0x34] sm:$0xf]
          %v675 = vld [vmem:[%s5 + $0x38] sm:$0xf]
          %v676 = vld [vmem:[%s5 + $0x3c] sm:$0xf]
          %v677 = vld [vmem:[%s7] sm:$0x1]
          %v679 = vlaneseq
          %v680 = vshrl.u32 %v679, 7
          %v681 = vsub.s32 0, %v680
          %v682 = vrot.slane %v677, %v681
          %v700 = vunpack.c.l.b16 %v661
          %v701 = vunpack.c.l.b16 %v662
          %v702 = vunpack.c.l.b16 %v663
          %v703 = vunpack.c.l.b16 %v664
          %v704 = vunpack.c.l.b16 %v665
          %v705 = vunpack.c.l.b16 %v666
          %v706 = vunpack.c.l.b16 %v667
          %v707 = vunpack.c.l.b16 %v668
          %v708 = vunpack.c.l.b16 %v669
          %v709 = vunpack.c.l.b16 %v670
          %v710 = vunpack.c.l.b16 %v671
          %v711 = vunpack.c.l.b16 %v672
          %v712 = vunpack.c.l.b16 %v673
          %v713 = vunpack.c.l.b16 %v674
          %v714 = vunpack.c.l.b16 %v675
          %v715 = vunpack.c.l.b16 %v676
          %v716 = vpack.c.b16 %v701, %v700
          %v717 = vpack.c.b16 %v703, %v702
          %v718 = vpack.c.b16 %v705, %v704
          %v719 = vpack.c.b16 %v707, %v706
          %v720 = vpack.c.b16 %v709, %v708
          %v721 = vpack.c.b16 %v711, %v710
          %v722 = vpack.c.b16 %v713, %v712
          %v723 = vpack.c.b16 %v715, %v714
          %732 = vmatprep.subr.bf16.mxu0 0
          %733 = vmatpush1.bf16.msra.mxu0 %v716
          %734 = vmatprep.subr.bf16.mxu0 0
          %735 = vmatpush1.bf16.msra.mxu0 %v717
          %736 = vmatprep.subr.bf16.mxu0 0
          %737 = vmatpush1.bf16.msra.mxu0 %v718
          %738 = vmatprep.subr.bf16.mxu0 0
          %739 = vmatpush1.bf16.msra.mxu0 %v719
          %740 = vmatprep.subr.bf16.mxu0 0
          %741 = vmatpush1.bf16.msra.mxu0 %v720
          %742 = vmatprep.subr.bf16.mxu0 0
          %743 = vmatpush1.bf16.msra.mxu0 %v721
          %744 = vmatprep.subr.bf16.mxu0 0
          %745 = vmatpush1.bf16.msra.mxu0 %v722
          %746 = vmatprep.subr.bf16.mxu0 0
          %747 = vmatpush1.bf16.msra.mxu0 %v723
          %748 = vmatprep.subr.bf16.mxu0 0
          %749 = vmatpush1.bf16.msra.mxu0 0
          %750 = vmatprep.subr.bf16.mxu0 0
          %751 = vmatpush1.bf16.msra.mxu0 0
          %752 = vmatprep.subr.bf16.mxu0 0
          %753 = vmatpush1.bf16.msra.mxu0 0
          %754 = vmatprep.subr.bf16.mxu0 0
          %755 = vmatpush1.bf16.msra.mxu0 0
          %756 = vmatprep.subr.bf16.mxu0 0
          %757 = vmatpush1.bf16.msra.mxu0 0
          %758 = vmatprep.subr.bf16.mxu0 0
          %759 = vmatpush1.bf16.msra.mxu0 0
          %760 = vmatprep.subr.bf16.mxu0 0
          %761 = vmatpush1.bf16.msra.mxu0 0
          %762 = vmatprep.subr.bf16.mxu0 0
          %763 = vmatpush1.bf16.msra.mxu0 0
          %764 = vmatprep.mubr.bf16.mxu0 0
          %765 = vmatmul.mubr.bf16.gmra.mrb[0].mxu0 %v546
          %v766 = vpop.f32.mrb[0].mxu0
          %v767 = vadd.f32 %v682, %v766
          %v768 = vpop.f32.mrb[0].mxu0
          %v769 = vpop.f32.mrb[0].mxu0
          %v770 = vadd.f32 %v682, %v769
          %v771 = vpop.f32.mrb[0].mxu0
          %772 = vdwg.mxu0
          %773 = vst [vmem:[#allocation3] sm:$0xff] %v767
          %774 = vst [vmem:[#allocation3 + $0x8] sm:$0xff] %v770
        $region64: #{modulate_layer_forward.1} parent=59 // pred_fallthru
          _
        %v775 = vld [vmem:[%s404] sm:$0xff]
        %v776 = vld [vmem:[%s404 + $0x8] sm:$0xff]
        %v777 = vld [vmem:[%s404 + $0x10] sm:$0xff]
        %v778 = vld [vmem:[%s404 + $0x18] sm:$0xff]
        %v779 = vld [vmem:[%s404 + $0x20] sm:$0xff]
        %v780 = vld [vmem:[%s404 + $0x28] sm:$0xff]
        %v781 = vld [vmem:[%s404 + $0x30] sm:$0xff]
        %v782 = vld [vmem:[%s404 + $0x38] sm:$0xff]
        %783 = vadd.xlane.f32.xlu0 %v775
        %v784 = vpop.xlane.xlu0 %783
        %785 = vadd.xlane.f32.xlu0 %v776
        %v786 = vpop.xlane.xlu0 %785
        %787 = vadd.xlane.f32.xlu0 %v777
        %v788 = vpop.xlane.xlu0 %787
        %789 = vadd.xlane.f32.xlu0 %v778
        %v790 = vpop.xlane.xlu0 %789
        %791 = vadd.xlane.f32.xlu0 %v779
        %v792 = vpop.xlane.xlu0 %791
        %793 = vadd.xlane.f32.xlu0 %v780
        %v794 = vpop.xlane.xlu0 %793
        %795 = vadd.xlane.f32.xlu0 %v781
        %v796 = vpop.xlane.xlu0 %795
        %797 = vadd.xlane.f32.xlu0 %v782
        %v798 = vpop.xlane.xlu0 %797
        %v799 = vrcp.pop 128.0
        %v800 = vmul.f32 %v784, %v799
        %v801 = vmul.f32 %v786, %v799
        %v802 = vmul.f32 %v788, %v799
        %v803 = vmul.f32 %v790, %v799
        %v804 = vmul.f32 %v792, %v799
        %v805 = vmul.f32 %v794, %v799
        %v806 = vmul.f32 %v796, %v799
        %v807 = vmul.f32 %v798, %v799
        %v808 = vsub.f32 %v775, %v800
        %v809 = vsub.f32 %v776, %v801
        %v810 = vsub.f32 %v777, %v802
        %v811 = vsub.f32 %v778, %v803
        %v812 = vsub.f32 %v779, %v804
        %v813 = vsub.f32 %v780, %v805
        %v814 = vsub.f32 %v781, %v806
        %v815 = vsub.f32 %v782, %v807
        %v816 = vmul.f32 %v808, %v808
        %v817 = vmul.f32 %v809, %v809
        %v818 = vmul.f32 %v810, %v810
        %v819 = vmul.f32 %v811, %v811
        %v820 = vmul.f32 %v812, %v812
        %v821 = vmul.f32 %v813, %v813
        %v822 = vmul.f32 %v814, %v814
        %v823 = vmul.f32 %v815, %v815
        %824 = vadd.xlane.f32.xlu0 %v816
        %v825 = vpop.xlane.xlu0 %824
        %826 = vadd.xlane.f32.xlu0 %v817
        %v827 = vpop.xlane.xlu0 %826
        %828 = vadd.xlane.f32.xlu0 %v818
        %v829 = vpop.xlane.xlu0 %828
        %830 = vadd.xlane.f32.xlu0 %v819
        %v831 = vpop.xlane.xlu0 %830
        %832 = vadd.xlane.f32.xlu0 %v820
        %v833 = vpop.xlane.xlu0 %832
        %834 = vadd.xlane.f32.xlu0 %v821
        %v835 = vpop.xlane.xlu0 %834
        %836 = vadd.xlane.f32.xlu0 %v822
        %v837 = vpop.xlane.xlu0 %836
        %838 = vadd.xlane.f32.xlu0 %v823
        %v839 = vpop.xlane.xlu0 %838
        %v840 = vmul.f32 %v825, %v799
        %v841 = vmul.f32 %v827, %v799
        %v842 = vmul.f32 %v829, %v799
        %v843 = vmul.f32 %v831, %v799
        %v844 = vmul.f32 %v833, %v799
        %v845 = vmul.f32 %v835, %v799
        %v846 = vmul.f32 %v837, %v799
        %v847 = vmul.f32 %v839, %v799
        %v848 = vadd.f32 %v840, 1e-06
        %v849 = vadd.f32 %v841, 1e-06
        %v850 = vadd.f32 %v842, 1e-06
        %v851 = vadd.f32 %v843, 1e-06
        %v852 = vadd.f32 %v844, 1e-06
        %v853 = vadd.f32 %v845, 1e-06
        %v854 = vadd.f32 %v846, 1e-06
        %v855 = vadd.f32 %v847, 1e-06
        %v856 = vrsqrt.pop %v848
        %v857 = vrsqrt.pop %v849
        %v858 = vrsqrt.pop %v850
        %v859 = vrsqrt.pop %v851
        %v860 = vrsqrt.pop %v852
        %v861 = vrsqrt.pop %v853
        %v862 = vrsqrt.pop %v854
        %v863 = vrsqrt.pop %v855
        %v864 = vmul.f32 %v808, %v856
        %v865 = vmul.f32 %v809, %v857
        %v866 = vmul.f32 %v810, %v858
        %v867 = vmul.f32 %v811, %v859
        %v868 = vmul.f32 %v812, %v860
        %v869 = vmul.f32 %v813, %v861
        %v870 = vmul.f32 %v814, %v862
        %v871 = vmul.f32 %v815, %v863
        %v872 = vld [vmem:[#allocation3] sm:$0xff]
        %v873 = vld [vmem:[#allocation3 + $0x8] sm:$0xff]
        %v874 = vadd.f32 %v872, 1.0
        %v875 = vadd.f32 %v873, 1.0
        %v876 = vmul.f32 %v864, %v874
        %v877 = vmul.f32 %v865, %v875
        %v878 = vmul.f32 %v866, %v874
        %v879 = vmul.f32 %v867, %v875
        %v880 = vmul.f32 %v868, %v874
        %v881 = vmul.f32 %v869, %v875
        %v882 = vmul.f32 %v870, %v874
        %v883 = vmul.f32 %v871, %v875
        %v884 = vld [vmem:[#allocation2] sm:$0xff]
        %v885 = vld [vmem:[#allocation2 + $0x8] sm:$0xff]
        %v886 = vadd.f32 %v876, %v884
        %v887 = vadd.f32 %v877, %v885
        %v888 = vadd.f32 %v878, %v884
        %v889 = vadd.f32 %v879, %v885
        %v890 = vadd.f32 %v880, %v884
        %v891 = vadd.f32 %v881, %v885
        %v892 = vadd.f32 %v882, %v884
        %v893 = vadd.f32 %v883, %v885
        %v894 = vpack.c.bf16 %v887, %v886
        %v895 = vpack.c.bf16 %v889, %v888
        %v896 = vpack.c.bf16 %v891, %v890
        %v897 = vpack.c.bf16 %v893, %v892
        %v898 = vld [vmem:[%s8] sm:$0xf]
        %v899 = vld [vmem:[%s8 + $0x4] sm:$0xf]
        %v900 = vld [vmem:[%s8 + $0x8] sm:$0xf]
        %v901 = vld [vmem:[%s8 + $0xc] sm:$0xf]
        %v902 = vld [vmem:[%s8 + $0x10] sm:$0xf]
        %v903 = vld [vmem:[%s8 + $0x14] sm:$0xf]
        %v904 = vld [vmem:[%s8 + $0x18] sm:$0xf]
        %v905 = vld [vmem:[%s8 + $0x1c] sm:$0xf]
        %v906 = vld [vmem:[%s8 + $0x20] sm:$0xf]
        %v907 = vld [vmem:[%s8 + $0x24] sm:$0xf]
        %v908 = vld [vmem:[%s8 + $0x28] sm:$0xf]
        %v909 = vld [vmem:[%s8 + $0x2c] sm:$0xf]
        %v910 = vld [vmem:[%s8 + $0x30] sm:$0xf]
        %v911 = vld [vmem:[%s8 + $0x34] sm:$0xf]
        %v912 = vld [vmem:[%s8 + $0x38] sm:$0xf]
        %v913 = vld [vmem:[%s8 + $0x3c] sm:$0xf]
        %v914 = vld [vmem:[%s9] sm:$0x1]
        %v916 = vlaneseq
        %v917 = vshrl.u32 %v916, 7
        %v918 = vsub.s32 0, %v917
        %v919 = vrot.slane %v914, %v918
        %v937 = vunpack.c.l.b16 %v898
        %v938 = vunpack.c.l.b16 %v899
        %v939 = vunpack.c.l.b16 %v900
        %v940 = vunpack.c.l.b16 %v901
        %v941 = vunpack.c.l.b16 %v902
        %v942 = vunpack.c.l.b16 %v903
        %v943 = vunpack.c.l.b16 %v904
        %v944 = vunpack.c.l.b16 %v905
        %v945 = vunpack.c.l.b16 %v906
        %v946 = vunpack.c.l.b16 %v907
        %v947 = vunpack.c.l.b16 %v908
        %v948 = vunpack.c.l.b16 %v909
        %v949 = vunpack.c.l.b16 %v910
        %v950 = vunpack.c.l.b16 %v911
        %v951 = vunpack.c.l.b16 %v912
        %v952 = vunpack.c.l.b16 %v913
        %v953 = vpack.c.b16 %v938, %v937
        %v954 = vpack.c.b16 %v940, %v939
        %v955 = vpack.c.b16 %v942, %v941
        %v956 = vpack.c.b16 %v944, %v943
        %v957 = vpack.c.b16 %v946, %v945
        %v958 = vpack.c.b16 %v948, %v947
        %v959 = vpack.c.b16 %v950, %v949
        %v960 = vpack.c.b16 %v952, %v951
        %969 = vmatprep.subr.bf16.mxu0 0
        %970 = vmatpush1.bf16.msra.mxu0 %v953
        %971 = vmatprep.subr.bf16.mxu0 0
        %972 = vmatpush1.bf16.msra.mxu0 %v954
        %973 = vmatprep.subr.bf16.mxu0 0
        %974 = vmatpush1.bf16.msra.mxu0 %v955
        %975 = vmatprep.subr.bf16.mxu0 0
        %976 = vmatpush1.bf16.msra.mxu0 %v956
        %977 = vmatprep.subr.bf16.mxu0 0
        %978 = vmatpush1.bf16.msra.mxu0 %v957
        %979 = vmatprep.subr.bf16.mxu0 0
        %980 = vmatpush1.bf16.msra.mxu0 %v958
        %981 = vmatprep.subr.bf16.mxu0 0
        %982 = vmatpush1.bf16.msra.mxu0 %v959
        %983 = vmatprep.subr.bf16.mxu0 0
        %984 = vmatpush1.bf16.msra.mxu0 %v960
        %985 = vmatprep.subr.bf16.mxu0 0
        %986 = vmatpush1.bf16.msra.mxu0 0
        %987 = vmatprep.subr.bf16.mxu0 0
        %988 = vmatpush1.bf16.msra.mxu0 0
        %989 = vmatprep.subr.bf16.mxu0 0
        %990 = vmatpush1.bf16.msra.mxu0 0
        %991 = vmatprep.subr.bf16.mxu0 0
        %992 = vmatpush1.bf16.msra.mxu0 0
        %993 = vmatprep.subr.bf16.mxu0 0
        %994 = vmatpush1.bf16.msra.mxu0 0
        %995 = vmatprep.subr.bf16.mxu0 0
        %996 = vmatpush1.bf16.msra.mxu0 0
        %997 = vmatprep.subr.bf16.mxu0 0
        %998 = vmatpush1.bf16.msra.mxu0 0
        %999 = vmatprep.subr.bf16.mxu0 0
        %1000 = vmatpush1.bf16.msra.mxu0 0
        %1001 = vmatprep.mubr.bf16.mxu0 0
        %1002 = vmatmul.mubr.bf16.gmra.mrb[0].mxu0 %v894
        %v1003 = vpop.f32.mrb[0].mxu0
        %v1004 = vadd.f32 %v919, %v1003
        %v1005 = vpop.f32.mrb[0].mxu0
        %v1006 = vpop.f32.mrb[0].mxu0
        %v1007 = vadd.f32 %v919, %v1006
        %v1008 = vpop.f32.mrb[0].mxu0
        %1009 = vmatprep.mubr.bf16.mxu0 0
        %1010 = vmatmul.mubr.bf16.gmra.mrb[0].mxu0 %v895
        %v1011 = vpop.f32.mrb[0].mxu0
        %v1012 = vadd.f32 %v919, %v1011
        %v1013 = vpop.f32.mrb[0].mxu0
        %v1014 = vpop.f32.mrb[0].mxu0
        %v1015 = vadd.f32 %v919, %v1014
        %v1016 = vpop.f32.mrb[0].mxu0
        %1017 = vmatprep.mubr.bf16.mxu0 0
        %1018 = vmatmul.mubr.bf16.gmra.mrb[0].mxu0 %v896
        %v1019 = vpop.f32.mrb[0].mxu0
        %v1020 = vadd.f32 %v919, %v1019
        %v1021 = vpop.f32.mrb[0].mxu0
        %v1022 = vpop.f32.mrb[0].mxu0
        %v1023 = vadd.f32 %v919, %v1022
        %v1024 = vpop.f32.mrb[0].mxu0
        %1025 = vmatprep.mubr.bf16.mxu0 0
        %1026 = vmatmul.mubr.bf16.gmra.mrb[0].mxu0 %v897
        %v1027 = vpop.f32.mrb[0].mxu0
        %v1028 = vadd.f32 %v919, %v1027
        %v1029 = vpop.f32.mrb[0].mxu0
        %v1030 = vpop.f32.mrb[0].mxu0
        %v1031 = vadd.f32 %v919, %v1030
        %v1032 = vpop.f32.mrb[0].mxu0
        %1033 = vdwg.mxu0
        %1034 = vst [vmem:[%s394] sm:$0xff] %v1004
        %1035 = vst [vmem:[%s394 + $0x8] sm:$0xff] %v1007
        %1036 = vst [vmem:[%s394 + $0x10] sm:$0xff] %v1012
        %1037 = vst [vmem:[%s394 + $0x18] sm:$0xff] %v1015
        %1038 = vst [vmem:[%s394 + $0x20] sm:$0xff] %v1020
        %1039 = vst [vmem:[%s394 + $0x28] sm:$0xff] %v1023
        %1040 = vst [vmem:[%s394 + $0x30] sm:$0xff] %v1028
        %1041 = vst [vmem:[%s394 + $0x38] sm:$0xff] %v1031
        %s1042 = sand.u32 %s268, 1
        %s1043 = scalar_lea.sflag [#allocation5], %s1042
        %s1044 = sand.u32 %s268, 1
        %s1045 = smul.addr %s1044, 64
        %s1046 = scalar_lea.vmem [#allocation4], %s1045
        // Predicated region
        $region65: #{modulate_layer_forward.1} parent=59 // pred_check
          %p1047 = pneg %p278
        $region66: #{modulate_layer_forward.1} parent=59 // pred_check_branch
          %1049 = sbr.rel (%p1047) target = $region68
        $region67: #{modulate_layer_forward.1} parent=59 // pred_region
          %s1050 = smul.u32 4, %s29
          %s1052 = ssub.s32 1024, 1024
          %1053 = vsyncadd %s1043, %s1052
          %s1054 = smul.addr %s1050, 2
          %s1055 = smul.addr %s28, 8
          %s1056 = sadd.s32 %s1054, %s1055
          %s1057 = smul.addr %s1056, 128
          %s1058 = scalar_lea.hbm %s10, %s1057
          %s1059 = sshll.u32 %s1046, 4
          %s1060 = int_to_ptr.vmem [resolvable:$true] %s1059
          %1065 = dma.vmem_to_hbm [thread:$0]  %s1060, 1024, %s1058, %s1043, 128, 128, 8
        $region68: #{modulate_layer_forward.1} parent=59 // pred_fallthru
          _
      $region60: #{modulate_layer_forward.1} parent=5 // pred_fallthru
        _
      %p1066 = scmp.le.s32.totalorder 2, %s19
      // Predicated region
      $region69: #{modulate_layer_forward.1} parent=5 // pred_check
        %p1067 = pneg %p1066
      $region70: #{modulate_layer_forward.1} parent=5 // pred_check_branch
        %1069 = sbr.rel (%p1067) target = $region72
      $region71: #{modulate_layer_forward.1} parent=5 // pred_region
        %s1070 = ssub.s32 %s19, 2
        // Predicated region
        $region73: #{modulate_layer_forward.1} parent=71 // pred_check
          %p1071 = pneg %p284
        $region74: #{modulate_layer_forward.1} parent=71 // pred_check_branch
          %1073 = sbr.rel (%p1071) target = $region76
        $region75: #{modulate_layer_forward.1} parent=71 // pred_region
          %s1074 = sand.u32 %s269, 1
          %s1075 = scalar_lea.sflag [#allocation5], %s1074
          %s1076 = sand.u32 %s269, 1
          %s1077 = smul.addr %s1076, 64
          %s1078 = scalar_lea.vmem [#allocation4], %s1077
          %1079 = dma.done %s1075, 1024
        $region76: #{modulate_layer_forward.1} parent=71 // pred_fallthru
          _
      $region72: #{modulate_layer_forward.1} parent=5 // pred_fallthru
        _
    $region6: #{modulate_layer_forward.1} parent=1 // loop_footer
      %s23 = sadd.s32 1, %s19
    $region7: #{modulate_layer_forward.1} parent=1 // loop_footer_branch
      %18 = sbr.rel target = $region3
    $region8: #{modulate_layer_forward.1} parent=1 // loop_exit
      _
    %1080 = vsyncpa [#allocation5], 1
    %s1081 = scalar_lea.sflag [#allocation5], 1
    %1082 = vsyncpa %s1081, 1

</llo_original>
